<compile_context>
chip_gen: v6e
topology: v6e:2x2x1
jax: 0.10.0
libtpu: 0.0.40
codegen_flags: <defaults>
</compile_context>

<pallas_src>
import jax
import jax.numpy as jnp
from jax.experimental import pallas as pl
from jax.experimental.pallas import tpu as pltpu


def init_params(key, target_dim, condition_dim, kernel_size, hidden_dim, num_layers):
    """Deterministic synthetic parameters with the same shapes as _TCNDiscriminator."""
    input_size = target_dim + condition_dim
    layers = []
    for i in range(num_layers):
        in_dim = input_size if i == 0 else hidden_dim
        out_dim = hidden_dim  # target_size == hidden_dim in this module
        key, k1, k2, k3, k4, k5, k6 = jax.random.split(key, 7)
        bnd1 = 1.0 / float(jnp.sqrt(in_dim * kernel_size))
        bnd2 = 1.0 / float(jnp.sqrt(hidden_dim * kernel_size))
        layer = {
            "w1": jax.random.uniform(k1, (kernel_size, in_dim, hidden_dim), jnp.float32, -bnd1, bnd1),
            "b1": jax.random.uniform(k2, (1, hidden_dim), jnp.float32, -bnd1, bnd1),
            "w2": jax.random.uniform(k3, (kernel_size, hidden_dim, out_dim), jnp.float32, -bnd2, bnd2),
            "b2": jax.random.uniform(k4, (1, out_dim), jnp.float32, -bnd2, bnd2),
        }
        if in_dim != out_dim:  # 1x1 skip projection (conv3) — only layer 0 here
            bnd3 = 1.0 / float(jnp.sqrt(in_dim))
            layer["w3"] = jax.random.uniform(k5, (in_dim, out_dim), jnp.float32, -bnd3, bnd3)
            layer["b3"] = jax.random.uniform(k6, (1, out_dim), jnp.float32, -bnd3, bnd3)
        layers.append(layer)
    key, kp1, kp2 = jax.random.split(key, 3)
    bndp = 1.0 / float(jnp.sqrt(hidden_dim))
    proj_w = jax.random.uniform(kp1, (hidden_dim, 1), jnp.float32, -bndp, bndp)
    proj_b = jax.random.uniform(kp2, (1, 1), jnp.float32, -bndp, bndp)
    return layers, proj_w, proj_b


def _make_kernel(num_layers, layer_shifts, layer_has_skip):
    """layer_shifts[i]: static tuple of causal shifts (ascending, all < S) for layer i.
    The wrapper stacks the matching weight taps (w[K-1-j] for shift j*dil) into one
    (n_taps*C_in, H) bf16 matrix per conv, so each conv is a single MXU matmul."""

    def kernel(*refs):
        idx = 0
        x_ref = refs[idx]; idx += 1
        layer_refs = []
        for i in range(num_layers):
            w1, b1, w2, b2 = refs[idx:idx + 4]; idx += 4
            if layer_has_skip[i]:
                w3, b3 = refs[idx:idx + 2]; idx += 2
            else:
                w3, b3 = None, None
            layer_refs.append((w1, b1, w2, b2, w3, b3))
        pw_ref, pb_ref = refs[idx:idx + 2]; idx += 2
        logits_ref, output_ref = refs[idx:idx + 2]

        Bb, S, _ = x_ref.shape
        M = Bb * S  # (batch, seq) flattened: every contraction is one tall MXU matmul

        def causal_conv(z3, wf_ref, b_ref, shifts):
            # z3: (Bb, S, C) f32; wf_ref: (n_taps*C, H) bf16; b_ref: (1, H) f32.
            # Causally shifted copies of the *input* (zero-filled on the left — exactly
            # PyTorch's causal padding, so no mask / iota needed) are concatenated along
            # lanes and contracted in ONE matmul (bf16 operands, f32 accumulation).
            C = z3.shape[-1]
            zb = z3.astype(jnp.bfloat16)
            pieces = []
            for s in shifts:                        # static unroll over the valid taps
                if s == 0:
                    pieces.append(zb)
                else:
                    pieces.append(jnp.concatenate(
                        [jnp.zeros((Bb, s, C), jnp.bfloat16), zb[:, :S - s, :]],
                        axis=1))
            zc = jnp.concatenate(pieces, axis=-1).reshape(M, len(shifts) * C)
            y = jnp.dot(zc, wf_ref[...], preferred_element_type=jnp.float32)
            return (y + b_ref[...]).reshape(Bb, S, -1)      # bias add in f32

        h = x_ref[...].astype(jnp.float32)                  # (Bb, S, C_in)
        for i in range(num_layers):
            w1, b1, w2, b2, w3, b3 = layer_refs[i]
            shifts = layer_shifts[i]
            residual = h
            y = jnp.maximum(causal_conv(h, w1, b1, shifts), 0.0)   # conv1 + ReLU
            y = causal_conv(y, w2, b2, shifts)                     # conv2
            if i < num_layers - 1:                                 # no ReLU on last block
                y = jnp.maximum(y, 0.0)
            if w3 is not None:   # 1x1 skip projection (bf16 MXU, f32 accumulate)
                # TODO(synk): could be folded into conv1's fused matmul as extra output
                # columns to raise MXU column occupancy on the first layer.
                r = jnp.dot(residual.reshape(M, -1).astype(jnp.bfloat16), w3[...],
                            preferred_element_type=jnp.float32) + b3[...]
                residual = r.reshape(Bb, S, -1)
            h = y + residual

        output_ref[...] = h.astype(output_ref.dtype)
        # Linear(H, 1) head: f32 VPU multiply + lane reduction, stored as a lane-dense
        # (Bblk, S) slab instead of 1-wide masked partial stores.
        logits = jnp.sum(h * pw_ref[...], axis=-1) + pb_ref[...]
        logits_ref[...] = logits.astype(logits_ref.dtype)

    return kernel


def _pick_batch_block(batch, seq_len, rows_target=1024, min_grid_steps=1):
    """Batch rows per grid step.

    v5e / v6e have a single TensorCore, so the grid is a serial loop: default to one fat
    step (Bblk*S ~ rows_target) and never force a second one.  On v7x pass
    min_grid_steps=2 so both TensorCores get a "parallel" step.  When the batch axis is
    actually tiled, the block is rounded to a multiple of 8 (sublane alignment); the
    wrapper pads the batch instead of decaying to per-sample steps."""
    bblk = max(1, min(batch, rows_target // max(seq_len, 1)))
    if min_grid_steps > 1:
        bblk = min(bblk, max(1, pl.cdiv(batch, min_grid_steps)))
    if pl.cdiv(batch, bblk) > 1:
        bblk = max(8, (bblk // 8) * 8)
    return bblk


def tcn_discriminator_forward(target, cond, layers, proj_w, proj_b, kernel_size,
                              dilation_base=2, rows_target=1024, min_grid_steps=1):
    # torch.cat([target, cond], dim=2) in (batch, seq, features) layout.
    x = jnp.concatenate([target, cond], axis=2).astype(jnp.float32)
    B, S, Cin = x.shape
    H = proj_w.shape[0]
    K = kernel_size
    num_layers = len(layers)
    layer_has_skip = tuple("w3" in l for l in layers)

    bblk = _pick_batch_block(B, S, rows_target, min_grid_steps)
    b_pad = pl.cdiv(B, bblk) * bblk
    if b_pad != B:   # pad odd/prime batches instead of shrinking the block to 1
        x = jnp.concatenate([x, jnp.zeros((b_pad - B, S, Cin), x.dtype)], axis=0)
    grid = (b_pad // bblk,)

    # Fused per-conv weights.  PyTorch's left-padded causal Conv1d applies w[k] at shift
    # (K-1-k)*dil, so the tap stacked at shift j*dil is w[K-1-j].  Taps whose shift >= S
    # would only ever see padding and are dropped statically.
    layer_shifts = []
    flat_params = []
    for i, l in enumerate(layers):
        dil = dilation_base ** i
        taps = [j for j in range(K) if j * dil < S]
        layer_shifts.append(tuple(j * dil for j in taps))
        w1f = jnp.concatenate([l["w1"][K - 1 - j] for j in taps], axis=0)
        w2f = jnp.concatenate([l["w2"][K - 1 - j] for j in taps], axis=0)
        flat_params += [w1f.astype(jnp.bfloat16), l["b1"].astype(jnp.float32),
                        w2f.astype(jnp.bfloat16), l["b2"].astype(jnp.float32)]
        if "w3" in l:
            flat_params += [l["w3"].astype(jnp.bfloat16), l["b3"].astype(jnp.float32)]
    # nn.Linear(H, 1) passed as an f32 (1, H) row: the head is a VPU multiply + channel
    # reduce instead of an N=1 MXU matmul.
    flat_params += [proj_w.reshape(1, H).astype(jnp.float32),
                    proj_b.reshape(1, 1).astype(jnp.float32)]

    in_specs = [pl.BlockSpec((bblk, S, Cin), lambda b: (b, 0, 0))]
    for p in flat_params:   # weights resident in VMEM (constant block index) across steps
        in_specs.append(pl.BlockSpec(p.shape, lambda b, _n=p.ndim: (0,) * _n))

    out_specs = [
        pl.BlockSpec((bblk, S), lambda b: (b, 0)),        # lane-dense logits slab
        pl.BlockSpec((bblk, S, H), lambda b: (b, 0, 0)),  # TCN activations
    ]
    out_shape = (
        jax.ShapeDtypeStruct((b_pad, S), jnp.float32),
        jax.ShapeDtypeStruct((b_pad, S, H), jnp.float32),
    )

    kernel = _make_kernel(num_layers, tuple(layer_shifts), layer_has_skip)

    # TODO(synk): for very long sequences also tile S with a dil*(K-1) halo per tile
    # (target roughly half the VMEM budget on v7x's 64 MiB vs v5e/v6e's 128 MiB).
    logits2d, output = pl.pallas_call(
        kernel,
        out_shape=out_shape,
        grid=grid,
        in_specs=in_specs,
        out_specs=out_specs,
        compiler_params=pltpu.CompilerParams(dimension_semantics=("parallel",)),
    )(x, *flat_params)

    logits = logits2d[:B].reshape(B, S, 1)   # module's (B, S, 1) logits layout
    return logits, output[:B]


def ref_forward(target, cond, layers, proj_w, proj_b, kernel_size, dilation_base=2):
    """Pure-JAX f32 reference mirroring the PyTorch module (vectorized over batch)."""
    x = jnp.concatenate([target, cond], axis=2).astype(jnp.float32)
    B, S, _ = x.shape
    K = kernel_size
    h = x
    for i, l in enumerate(layers):
        dil = dilation_base ** i
        pad = dil * (K - 1)

        def conv(z, w, b):
            zp = jnp.pad(z, ((0, 0), (pad, 0), (0, 0)))
            acc = jnp.zeros((B, S, w.shape[2]), jnp.float32)
            for k in range(K):
                acc = acc + jnp.einsum("bsc,co->bso", zp[:, k * dil:k * dil + S, :], w[k])
            return acc + b[None]

        residual = h
        y = jax.nn.relu(conv(h, l["w1"], l["b1"]))
        y = conv(y, l["w2"], l["b2"])
        if i < len(layers) - 1:
            y = jax.nn.relu(y)
        if "w3" in l:
            residual = jnp.einsum("bsc,co->bso", residual, l["w3"]) + l["b3"][None]
        h = y + residual
    logits = jnp.sum(h * proj_w[:, 0][None, None, :], axis=-1, keepdims=True) + proj_b[None]
    return logits, h


if __name__ == "__main__":
    target_dim, condition_dim = 3, 2
    kernel_size, hidden_dim, num_layers = 3, 32, 2
    B, S = 2, 16

    key = jax.random.PRNGKey(0)
    kp, kt, kc = jax.random.split(key, 3)
    layers, proj_w, proj_b = init_params(kp, target_dim, condition_dim,
                                         kernel_size, hidden_dim, num_layers)
    target = jax.random.normal(kt, (B, S, target_dim), dtype=jnp.float32)
    cond = jax.random.normal(kc, (B, S, condition_dim), dtype=jnp.float32)

    logits, output = tcn_discriminator_forward(target, cond, layers, proj_w, proj_b,
                                               kernel_size)
    jax.block_until_ready((logits, output))

    ref_logits, ref_output = ref_forward(target, cond, layers, proj_w, proj_b, kernel_size)
    assert logits.shape == (B, S, 1) and output.shape == (B, S, hidden_dim)
    # Tolerance loosened for bf16 MXU operands (f32 accumulation, contractions <= 96).
    assert jnp.allclose(logits, ref_logits, atol=5e-2, rtol=5e-2)
    assert jnp.allclose(output, ref_output, atol=5e-2, rtol=5e-2)
    print("KERNEL_OK")
</pallas_src>

<mosaic_0001>
module attributes {stable_mosaic.version = 11 : i64} {
  func.func @kernel(%arg0: i32, %arg1: memref<2x16x5xf32, #tpu.memory_space<vmem>>, %arg2: memref<15x32xbf16, #tpu.memory_space<vmem>>, %arg3: memref<1x32xf32, #tpu.memory_space<vmem>>, %arg4: memref<96x32xbf16, #tpu.memory_space<vmem>>, %arg5: memref<1x32xf32, #tpu.memory_space<vmem>>, %arg6: memref<5x32xbf16, #tpu.memory_space<vmem>>, %arg7: memref<1x32xf32, #tpu.memory_space<vmem>>, %arg8: memref<96x32xbf16, #tpu.memory_space<vmem>>, %arg9: memref<1x32xf32, #tpu.memory_space<vmem>>, %arg10: memref<96x32xbf16, #tpu.memory_space<vmem>>, %arg11: memref<1x32xf32, #tpu.memory_space<vmem>>, %arg12: memref<1x32xf32, #tpu.memory_space<vmem>>, %arg13: memref<1x1xf32, #tpu.memory_space<vmem>>, %arg14: memref<2x16xf32, #tpu.memory_space<vmem>>, %arg15: memref<2x16x32xf32, #tpu.memory_space<vmem>>) attributes {dimension_semantics = [#tpu.dimension_semantics<parallel>], iteration_bounds = array<i64: 1>, scalar_prefetch = 0 : i64, scratch_operands = 0 : i64, tpu.core_type = #tpu.core_type<tc>, window_params = [{transform_indices = @transform_0, window_bounds = array<i64: 2, 16, 5>}, {pipeline_mode = #tpu.pipeline_mode<synchronous>, transform_indices = @transform_1, window_bounds = array<i64: 15, 32>}, {pipeline_mode = #tpu.pipeline_mode<synchronous>, transform_indices = @transform_2, window_bounds = array<i64: 1, 32>}, {pipeline_mode = #tpu.pipeline_mode<synchronous>, transform_indices = @transform_3, window_bounds = array<i64: 96, 32>}, {pipeline_mode = #tpu.pipeline_mode<synchronous>, transform_indices = @transform_4, window_bounds = array<i64: 1, 32>}, {pipeline_mode = #tpu.pipeline_mode<synchronous>, transform_indices = @transform_5, window_bounds = array<i64: 5, 32>}, {pipeline_mode = #tpu.pipeline_mode<synchronous>, transform_indices = @transform_6, window_bounds = array<i64: 1, 32>}, {pipeline_mode = #tpu.pipeline_mode<synchronous>, transform_indices = @transform_7, window_bounds = array<i64: 96, 32>}, {pipeline_mode = #tpu.pipeline_mode<synchronous>, transform_indices = @transform_8, window_bounds = array<i64: 1, 32>}, {pipeline_mode = #tpu.pipeline_mode<synchronous>, transform_indices = @transform_9, window_bounds = array<i64: 96, 32>}, {pipeline_mode = #tpu.pipeline_mode<synchronous>, transform_indices = @transform_10, window_bounds = array<i64: 1, 32>}, {pipeline_mode = #tpu.pipeline_mode<synchronous>, transform_indices = @transform_11, window_bounds = array<i64: 1, 32>}, {pipeline_mode = #tpu.pipeline_mode<synchronous>, transform_indices = @transform_12, window_bounds = array<i64: 1, 1>}, {transform_indices = @transform_13, window_bounds = array<i64: 2, 16>}, {transform_indices = @transform_14, window_bounds = array<i64: 2, 16, 32>}]} {
    %c0 = arith.constant 0 : index
    %c0_0 = arith.constant 0 : index
    %c0_1 = arith.constant 0 : index
    %0 = vector.load %arg1[%c0, %c0_0, %c0_1] : memref<2x16x5xf32, #tpu.memory_space<vmem>>, vector<2x16x5xf32>
    %1 = arith.truncf %0 : vector<2x16x5xf32> to vector<2x16x5xbf16>
    %cst = arith.constant 0.000000e+00 : bf16
    %2 = vector.broadcast %cst : bf16 to vector<2x1x5xbf16>
    %3 = vector.extract_strided_slice %1 {offsets = [0, 0, 0], sizes = [2, 15, 5], strides = [1, 1, 1]} : vector<2x16x5xbf16> to vector<2x15x5xbf16>
    %4 = tpu.concatenate %2, %3 in 1 : vector<2x1x5xbf16>, vector<2x15x5xbf16> -> vector<2x16x5xbf16>
    %cst_2 = arith.constant 0.000000e+00 : bf16
    %5 = vector.broadcast %cst_2 : bf16 to vector<2x2x5xbf16>
    %6 = vector.extract_strided_slice %1 {offsets = [0, 0, 0], sizes = [2, 14, 5], strides = [1, 1, 1]} : vector<2x16x5xbf16> to vector<2x14x5xbf16>
    %7 = tpu.concatenate %5, %6 in 1 : vector<2x2x5xbf16>, vector<2x14x5xbf16> -> vector<2x16x5xbf16>
    %8 = tpu.concatenate %1, %4, %7 in 2 : vector<2x16x5xbf16>, vector<2x16x5xbf16>, vector<2x16x5xbf16> -> vector<2x16x15xbf16>
    %9 = vector.shape_cast %8 : vector<2x16x15xbf16> to vector<32x15xbf16>
    %c0_3 = arith.constant 0 : index
    %c0_4 = arith.constant 0 : index
    %10 = vector.load %arg2[%c0_3, %c0_4] : memref<15x32xbf16, #tpu.memory_space<vmem>>, vector<15x32xbf16>
    %cst_5 = arith.constant dense<0.000000e+00> : vector<32x32xf32>
    %11 = tpu.matmul %9, %10, %cst_5 {dimension_numbers = #tpu.dot_dimension_numbers<[1], [0], [0], [1], [0, 0, 1, 1], [], []>} : vector<32x15xbf16>, vector<15x32xbf16>, vector<32x32xf32> -> vector<32x32xf32>
    %c0_6 = arith.constant 0 : index
    %c0_7 = arith.constant 0 : index
    %12 = vector.load %arg3[%c0_6, %c0_7] : memref<1x32xf32, #tpu.memory_space<vmem>>, vector<1x32xf32>
    %13 = vector.broadcast %12 : vector<1x32xf32> to vector<32x32xf32>
    %14 = arith.addf %11, %13 : vector<32x32xf32>
    %15 = vector.shape_cast %14 : vector<32x32xf32> to vector<2x16x32xf32>
    %cst_8 = arith.constant 0.000000e+00 : f32
    %16 = vector.broadcast %cst_8 : f32 to vector<2x16x32xf32>
    %17 = arith.maximumf %15, %16 : vector<2x16x32xf32>
    %18 = arith.truncf %17 : vector<2x16x32xf32> to vector<2x16x32xbf16>
    %cst_9 = arith.constant 0.000000e+00 : bf16
    %19 = vector.broadcast %cst_9 : bf16 to vector<2x1x32xbf16>
    %20 = vector.extract_strided_slice %18 {offsets = [0, 0, 0], sizes = [2, 15, 32], strides = [1, 1, 1]} : vector<2x16x32xbf16> to vector<2x15x32xbf16>
    %21 = tpu.concatenate %19, %20 in 1 : vector<2x1x32xbf16>, vector<2x15x32xbf16> -> vector<2x16x32xbf16>
    %cst_10 = arith.constant 0.000000e+00 : bf16
    %22 = vector.broadcast %cst_10 : bf16 to vector<2x2x32xbf16>
    %23 = vector.extract_strided_slice %18 {offsets = [0, 0, 0], sizes = [2, 14, 32], strides = [1, 1, 1]} : vector<2x16x32xbf16> to vector<2x14x32xbf16>
    %24 = tpu.concatenate %22, %23 in 1 : vector<2x2x32xbf16>, vector<2x14x32xbf16> -> vector<2x16x32xbf16>
    %25 = tpu.concatenate %18, %21, %24 in 2 : vector<2x16x32xbf16>, vector<2x16x32xbf16>, vector<2x16x32xbf16> -> vector<2x16x96xbf16>
    %26 = vector.shape_cast %25 : vector<2x16x96xbf16> to vector<32x96xbf16>
    %c0_11 = arith.constant 0 : index
    %c0_12 = arith.constant 0 : index
    %27 = vector.load %arg4[%c0_11, %c0_12] : memref<96x32xbf16, #tpu.memory_space<vmem>>, vector<96x32xbf16>
    %cst_13 = arith.constant dense<0.000000e+00> : vector<32x32xf32>
    %28 = tpu.matmul %26, %27, %cst_13 {dimension_numbers = #tpu.dot_dimension_numbers<[1], [0], [0], [1], [0, 0, 1, 1], [], []>} : vector<32x96xbf16>, vector<96x32xbf16>, vector<32x32xf32> -> vector<32x32xf32>
    %c0_14 = arith.constant 0 : index
    %c0_15 = arith.constant 0 : index
    %29 = vector.load %arg5[%c0_14, %c0_15] : memref<1x32xf32, #tpu.memory_space<vmem>>, vector<1x32xf32>
    %30 = vector.broadcast %29 : vector<1x32xf32> to vector<32x32xf32>
    %31 = arith.addf %28, %30 : vector<32x32xf32>
    %32 = vector.shape_cast %31 : vector<32x32xf32> to vector<2x16x32xf32>
    %cst_16 = arith.constant 0.000000e+00 : f32
    %33 = vector.broadcast %cst_16 : f32 to vector<2x16x32xf32>
    %34 = arith.maximumf %32, %33 : vector<2x16x32xf32>
    %35 = vector.shape_cast %0 : vector<2x16x5xf32> to vector<32x5xf32>
    %36 = arith.truncf %35 : vector<32x5xf32> to vector<32x5xbf16>
    %c0_17 = arith.constant 0 : index
    %c0_18 = arith.constant 0 : index
    %37 = vector.load %arg6[%c0_17, %c0_18] : memref<5x32xbf16, #tpu.memory_space<vmem>>, vector<5x32xbf16>
    %cst_19 = arith.constant dense<0.000000e+00> : vector<32x32xf32>
    %38 = tpu.matmul %36, %37, %cst_19 {dimension_numbers = #tpu.dot_dimension_numbers<[1], [0], [0], [1], [0, 0, 1, 1], [], []>} : vector<32x5xbf16>, vector<5x32xbf16>, vector<32x32xf32> -> vector<32x32xf32>
    %c0_20 = arith.constant 0 : index
    %c0_21 = arith.constant 0 : index
    %39 = vector.load %arg7[%c0_20, %c0_21] : memref<1x32xf32, #tpu.memory_space<vmem>>, vector<1x32xf32>
    %40 = vector.broadcast %39 : vector<1x32xf32> to vector<32x32xf32>
    %41 = arith.addf %38, %40 : vector<32x32xf32>
    %42 = vector.shape_cast %41 : vector<32x32xf32> to vector<2x16x32xf32>
    %43 = arith.addf %34, %42 : vector<2x16x32xf32>
    %44 = arith.truncf %43 : vector<2x16x32xf32> to vector<2x16x32xbf16>
    %cst_22 = arith.constant 0.000000e+00 : bf16
    %45 = vector.broadcast %cst_22 : bf16 to vector<2x2x32xbf16>
    %46 = vector.extract_strided_slice %44 {offsets = [0, 0, 0], sizes = [2, 14, 32], strides = [1, 1, 1]} : vector<2x16x32xbf16> to vector<2x14x32xbf16>
    %47 = tpu.concatenate %45, %46 in 1 : vector<2x2x32xbf16>, vector<2x14x32xbf16> -> vector<2x16x32xbf16>
    %cst_23 = arith.constant 0.000000e+00 : bf16
    %48 = vector.broadcast %cst_23 : bf16 to vector<2x4x32xbf16>
    %49 = vector.extract_strided_slice %44 {offsets = [0, 0, 0], sizes = [2, 12, 32], strides = [1, 1, 1]} : vector<2x16x32xbf16> to vector<2x12x32xbf16>
    %50 = tpu.concatenate %48, %49 in 1 : vector<2x4x32xbf16>, vector<2x12x32xbf16> -> vector<2x16x32xbf16>
    %51 = tpu.concatenate %44, %47, %50 in 2 : vector<2x16x32xbf16>, vector<2x16x32xbf16>, vector<2x16x32xbf16> -> vector<2x16x96xbf16>
    %52 = vector.shape_cast %51 : vector<2x16x96xbf16> to vector<32x96xbf16>
    %c0_24 = arith.constant 0 : index
    %c0_25 = arith.constant 0 : index
    %53 = vector.load %arg8[%c0_24, %c0_25] : memref<96x32xbf16, #tpu.memory_space<vmem>>, vector<96x32xbf16>
    %cst_26 = arith.constant dense<0.000000e+00> : vector<32x32xf32>
    %54 = tpu.matmul %52, %53, %cst_26 {dimension_numbers = #tpu.dot_dimension_numbers<[1], [0], [0], [1], [0, 0, 1, 1], [], []>} : vector<32x96xbf16>, vector<96x32xbf16>, vector<32x32xf32> -> vector<32x32xf32>
    %c0_27 = arith.constant 0 : index
    %c0_28 = arith.constant 0 : index
    %55 = vector.load %arg9[%c0_27, %c0_28] : memref<1x32xf32, #tpu.memory_space<vmem>>, vector<1x32xf32>
    %56 = vector.broadcast %55 : vector<1x32xf32> to vector<32x32xf32>
    %57 = arith.addf %54, %56 : vector<32x32xf32>
    %58 = vector.shape_cast %57 : vector<32x32xf32> to vector<2x16x32xf32>
    %cst_29 = arith.constant 0.000000e+00 : f32
    %59 = vector.broadcast %cst_29 : f32 to vector<2x16x32xf32>
    %60 = arith.maximumf %58, %59 : vector<2x16x32xf32>
    %61 = arith.truncf %60 : vector<2x16x32xf32> to vector<2x16x32xbf16>
    %cst_30 = arith.constant 0.000000e+00 : bf16
    %62 = vector.broadcast %cst_30 : bf16 to vector<2x2x32xbf16>
    %63 = vector.extract_strided_slice %61 {offsets = [0, 0, 0], sizes = [2, 14, 32], strides = [1, 1, 1]} : vector<2x16x32xbf16> to vector<2x14x32xbf16>
    %64 = tpu.concatenate %62, %63 in 1 : vector<2x2x32xbf16>, vector<2x14x32xbf16> -> vector<2x16x32xbf16>
    %cst_31 = arith.constant 0.000000e+00 : bf16
    %65 = vector.broadcast %cst_31 : bf16 to vector<2x4x32xbf16>
    %66 = vector.extract_strided_slice %61 {offsets = [0, 0, 0], sizes = [2, 12, 32], strides = [1, 1, 1]} : vector<2x16x32xbf16> to vector<2x12x32xbf16>
    %67 = tpu.concatenate %65, %66 in 1 : vector<2x4x32xbf16>, vector<2x12x32xbf16> -> vector<2x16x32xbf16>
    %68 = tpu.concatenate %61, %64, %67 in 2 : vector<2x16x32xbf16>, vector<2x16x32xbf16>, vector<2x16x32xbf16> -> vector<2x16x96xbf16>
    %69 = vector.shape_cast %68 : vector<2x16x96xbf16> to vector<32x96xbf16>
    %c0_32 = arith.constant 0 : index
    %c0_33 = arith.constant 0 : index
    %70 = vector.load %arg10[%c0_32, %c0_33] : memref<96x32xbf16, #tpu.memory_space<vmem>>, vector<96x32xbf16>
    %cst_34 = arith.constant dense<0.000000e+00> : vector<32x32xf32>
    %71 = tpu.matmul %69, %70, %cst_34 {dimension_numbers = #tpu.dot_dimension_numbers<[1], [0], [0], [1], [0, 0, 1, 1], [], []>} : vector<32x96xbf16>, vector<96x32xbf16>, vector<32x32xf32> -> vector<32x32xf32>
    %c0_35 = arith.constant 0 : index
    %c0_36 = arith.constant 0 : index
    %72 = vector.load %arg11[%c0_35, %c0_36] : memref<1x32xf32, #tpu.memory_space<vmem>>, vector<1x32xf32>
    %73 = vector.broadcast %72 : vector<1x32xf32> to vector<32x32xf32>
    %74 = arith.addf %71, %73 : vector<32x32xf32>
    %75 = vector.shape_cast %74 : vector<32x32xf32> to vector<2x16x32xf32>
    %76 = arith.addf %75, %43 : vector<2x16x32xf32>
    %c0_37 = arith.constant 0 : index
    %c0_38 = arith.constant 0 : index
    %c0_39 = arith.constant 0 : index
    %77 = vector.load %arg15[%c0_37, %c0_38, %c0_39] : memref<2x16x32xf32, #tpu.memory_space<vmem>>, vector<2x16x32xf32>
    tpu.vector_store %arg15[%c0_37, %c0_38, %c0_39], %76 {strides = array<i32>} : memref<2x16x32xf32, #tpu.memory_space<vmem>>, vector<2x16x32xf32>,
    %c0_40 = arith.constant 0 : index
    %c0_41 = arith.constant 0 : index
    %78 = vector.load %arg12[%c0_40, %c0_41] : memref<1x32xf32, #tpu.memory_space<vmem>>, vector<1x32xf32>
    %79 = vector.shape_cast %78 : vector<1x32xf32> to vector<1x1x32xf32>
    %80 = vector.broadcast %79 : vector<1x1x32xf32> to vector<2x16x32xf32>
    %81 = arith.mulf %76, %80 : vector<2x16x32xf32>
    %cst_42 = arith.constant dense<0.000000e+00> : vector<2x16xf32>
    %82 = vector.multi_reduction <add>, %81, %cst_42 [2] : vector<2x16x32xf32> to vector<2x16xf32>
    %c0_43 = arith.constant 0 : index
    %c0_44 = arith.constant 0 : index
    %83 = vector.load %arg13[%c0_43, %c0_44] : memref<1x1xf32, #tpu.memory_space<vmem>>, vector<1x1xf32>
    %84 = vector.broadcast %83 : vector<1x1xf32> to vector<2x16xf32>
    %85 = arith.addf %82, %84 : vector<2x16xf32>
    %c0_45 = arith.constant 0 : index
    %c0_46 = arith.constant 0 : index
    %86 = vector.load %arg14[%c0_45, %c0_46] : memref<2x16xf32, #tpu.memory_space<vmem>>, vector<2x16xf32>
    tpu.vector_store %arg14[%c0_45, %c0_46], %85 {strides = array<i32>} : memref<2x16xf32, #tpu.memory_space<vmem>>, vector<2x16xf32>,
    return
  }
  func.func @transform_0(%arg0: i32) -> (i32, i32, i32) {
    %c0_i32 = arith.constant 0 : i32
    %c0_i32_0 = arith.constant 0 : i32
    %c0_i32_1 = arith.constant 0 : i32
    return %arg0, %c0_i32, %c0_i32_0 : i32, i32, i32
  }
  func.func @transform_1(%arg0: i32) -> (i32, i32) {
    %c0_i32 = arith.constant 0 : i32
    %c0_i32_0 = arith.constant 0 : i32
    %c0_i32_1 = arith.constant 0 : i32
    return %c0_i32, %c0_i32_0 : i32, i32
  }
  func.func @transform_2(%arg0: i32) -> (i32, i32) {
    %c0_i32 = arith.constant 0 : i32
    %c0_i32_0 = arith.constant 0 : i32
    %c0_i32_1 = arith.constant 0 : i32
    return %c0_i32, %c0_i32_0 : i32, i32
  }
  func.func @transform_3(%arg0: i32) -> (i32, i32) {
    %c0_i32 = arith.constant 0 : i32
    %c0_i32_0 = arith.constant 0 : i32
    %c0_i32_1 = arith.constant 0 : i32
    return %c0_i32, %c0_i32_0 : i32, i32
  }
  func.func @transform_4(%arg0: i32) -> (i32, i32) {
    %c0_i32 = arith.constant 0 : i32
    %c0_i32_0 = arith.constant 0 : i32
    %c0_i32_1 = arith.constant 0 : i32
    return %c0_i32, %c0_i32_0 : i32, i32
  }
  func.func @transform_5(%arg0: i32) -> (i32, i32) {
    %c0_i32 = arith.constant 0 : i32
    %c0_i32_0 = arith.constant 0 : i32
    %c0_i32_1 = arith.constant 0 : i32
    return %c0_i32, %c0_i32_0 : i32, i32
  }
  func.func @transform_6(%arg0: i32) -> (i32, i32) {
    %c0_i32 = arith.constant 0 : i32
    %c0_i32_0 = arith.constant 0 : i32
    %c0_i32_1 = arith.constant 0 : i32
    return %c0_i32, %c0_i32_0 : i32, i32
  }
  func.func @transform_7(%arg0: i32) -> (i32, i32) {
    %c0_i32 = arith.constant 0 : i32
    %c0_i32_0 = arith.constant 0 : i32
    %c0_i32_1 = arith.constant 0 : i32
    return %c0_i32, %c0_i32_0 : i32, i32
  }
  func.func @transform_8(%arg0: i32) -> (i32, i32) {
    %c0_i32 = arith.constant 0 : i32
    %c0_i32_0 = arith.constant 0 : i32
    %c0_i32_1 = arith.constant 0 : i32
    return %c0_i32, %c0_i32_0 : i32, i32
  }
  func.func @transform_9(%arg0: i32) -> (i32, i32) {
    %c0_i32 = arith.constant 0 : i32
    %c0_i32_0 = arith.constant 0 : i32
    %c0_i32_1 = arith.constant 0 : i32
    return %c0_i32, %c0_i32_0 : i32, i32
  }
  func.func @transform_10(%arg0: i32) -> (i32, i32) {
    %c0_i32 = arith.constant 0 : i32
    %c0_i32_0 = arith.constant 0 : i32
    %c0_i32_1 = arith.constant 0 : i32
    return %c0_i32, %c0_i32_0 : i32, i32
  }
  func.func @transform_11(%arg0: i32) -> (i32, i32) {
    %c0_i32 = arith.constant 0 : i32
    %c0_i32_0 = arith.constant 0 : i32
    %c0_i32_1 = arith.constant 0 : i32
    return %c0_i32, %c0_i32_0 : i32, i32
  }
  func.func @transform_12(%arg0: i32) -> (i32, i32) {
    %c0_i32 = arith.constant 0 : i32
    %c0_i32_0 = arith.constant 0 : i32
    %c0_i32_1 = arith.constant 0 : i32
    return %c0_i32, %c0_i32_0 : i32, i32
  }
  func.func @transform_13(%arg0: i32) -> (i32, i32) {
    %c0_i32 = arith.constant 0 : i32
    %c0_i32_0 = arith.constant 0 : i32
    return %arg0, %c0_i32 : i32, i32
  }
  func.func @transform_14(%arg0: i32) -> (i32, i32, i32) {
    %c0_i32 = arith.constant 0 : i32
    %c0_i32_0 = arith.constant 0 : i32
    %c0_i32_1 = arith.constant 0 : i32
    return %arg0, %c0_i32, %c0_i32_0 : i32, i32, i32
  }
}

</mosaic_0001>

<llo_original>
// kernel: tpu_custom_call.1
$region0: #{tpu_custom_call.1}
  #allocation0 [shape = 'u32[]', space=smem, size = 0x4, offset = 0x4, fixed_abs, tag = 'smem constant byte address 0x4 - core index']
  #allocation1 [shape = 'u32[144,128]{1,0:T(1,128)}', space=vmem, size = 0x12000, scoped, tag = 'internal scratch']
  #allocation2 [shape = 'f32[1,1]{1,0:T(1,128)S(1)}', space=vmem, size = 0x200, scoped, tag = 'scoped memory for tpu_custom_call.1']
  %s0 = inlined_call_operand.vmem [shape: f32[2,16,5], index: 0, kind: input, shape index: {}]
  %s1 = inlined_call_operand.vmem [shape: bf16[15,32], index: 1, kind: input, shape index: {}]
  %s2 = inlined_call_operand.vmem [shape: f32[1,32], index: 2, kind: input, shape index: {}]
  %s3 = inlined_call_operand.vmem [shape: bf16[96,32], index: 3, kind: input, shape index: {}]
  %s4 = inlined_call_operand.vmem [shape: f32[1,32], index: 4, kind: input, shape index: {}]
  %s5 = inlined_call_operand.vmem [shape: bf16[5,32], index: 5, kind: input, shape index: {}]
  %s6 = inlined_call_operand.vmem [shape: f32[1,32], index: 6, kind: input, shape index: {}]
  %s7 = inlined_call_operand.vmem [shape: bf16[96,32], index: 7, kind: input, shape index: {}]
  %s8 = inlined_call_operand.vmem [shape: f32[1,32], index: 8, kind: input, shape index: {}]
  %s9 = inlined_call_operand.vmem [shape: bf16[96,32], index: 9, kind: input, shape index: {}]
  %s10 = inlined_call_operand.vmem [shape: f32[1,32], index: 10, kind: input, shape index: {}]
  %s11 = inlined_call_operand.vmem [shape: f32[1,32], index: 11, kind: input, shape index: {}]
  %s12 = inlined_call_operand.<no memory space> [shape: f32[1,1], index: 12, kind: input, shape index: {}]
  %s13 = inlined_call_operand.hbm [shape: f32[2,16], index: 13, kind: output, shape index: {0}]
  %s14 = inlined_call_operand.hbm [shape: f32[2,16,32], index: 14, kind: output, shape index: {1}]
  %15 = xla_tuple %s13, %s14
  %s16 = sld [smem:[#allocation0]]
  $region70: #{tpu_custom_call.1} parent=0
    _
  %s18 = ssub.s32 1, %s16
  %s19 = scalar_select 0, %s18, %s16
  %v20 = vstv %s12
  %21 = vst [vmem:[#allocation2] sm:$0x1] %v20
  $region1: #{tpu_custom_call.1} parent=0
    #allocation3 [shape = 'u8[1024]{0}', space=vmem, size = 0x400, scoped, tag = 'output window, operand 0, single buffered']
    #allocation4 [shape = 's32[1]{0}', space=sflag, size = 0x4, scoped, tag = 'scoped memory for tpu_custom_call.1']
    #allocation5 [shape = 'u8[16384]{0}', space=vmem, size = 0x4000, scoped, tag = 'output window, operand 1, single buffered']
    #allocation6 [shape = 's32[1]{0}', space=sflag, size = 0x4, scoped, tag = 'scoped memory for tpu_custom_call.1']
    %22 = vsyncpa [#allocation4], 0
    %23 = vsyncpa [#allocation6], 0
    // Predicated region
    $region2: #{tpu_custom_call.1} parent=1 // pred_check
      _
    $region3: #{tpu_custom_call.1} parent=1 // pred_check_branch
      %25 = sbr.rel (0) target = $region5
    $region4: #{tpu_custom_call.1} parent=1 // pred_region
      _
    $region5: #{tpu_custom_call.1} parent=1 // pred_fallthru
      _
    // Predicated region
    $region6: #{tpu_custom_call.1} parent=1 // pred_check
      _
    $region7: #{tpu_custom_call.1} parent=1 // pred_check_branch
      %27 = sbr.rel (0) target = $region9
    $region8: #{tpu_custom_call.1} parent=1 // pred_region
      _
    $region9: #{tpu_custom_call.1} parent=1 // pred_fallthru
      _
    // Predicated region
    $region10: #{tpu_custom_call.1} parent=1 // pred_check
      _
    $region11: #{tpu_custom_call.1} parent=1 // pred_check_branch
      %29 = sbr.rel (0) target = $region13
    $region12: #{tpu_custom_call.1} parent=1 // pred_region
      _
    $region13: #{tpu_custom_call.1} parent=1 // pred_fallthru
      _
    // Predicated region
    $region14: #{tpu_custom_call.1} parent=1 // pred_check
      _
    $region15: #{tpu_custom_call.1} parent=1 // pred_check_branch
      %31 = sbr.rel (0) target = $region17
    $region16: #{tpu_custom_call.1} parent=1 // pred_region
      _
    $region17: #{tpu_custom_call.1} parent=1 // pred_fallthru
      _
    // Predicated region
    $region18: #{tpu_custom_call.1} parent=1 // pred_check
      _
    $region19: #{tpu_custom_call.1} parent=1 // pred_check_branch
      %33 = sbr.rel (0) target = $region21
    $region20: #{tpu_custom_call.1} parent=1 // pred_region
      _
    $region21: #{tpu_custom_call.1} parent=1 // pred_fallthru
      _
    // Predicated region
    $region22: #{tpu_custom_call.1} parent=1 // pred_check
      _
    $region23: #{tpu_custom_call.1} parent=1 // pred_check_branch
      %35 = sbr.rel (0) target = $region25
    $region24: #{tpu_custom_call.1} parent=1 // pred_region
      _
    $region25: #{tpu_custom_call.1} parent=1 // pred_fallthru
      _
    // Predicated region
    $region26: #{tpu_custom_call.1} parent=1 // pred_check
      _
    $region27: #{tpu_custom_call.1} parent=1 // pred_check_branch
      %37 = sbr.rel (0) target = $region29
    $region28: #{tpu_custom_call.1} parent=1 // pred_region
      _
    $region29: #{tpu_custom_call.1} parent=1 // pred_fallthru
      _
    // Predicated region
    $region30: #{tpu_custom_call.1} parent=1 // pred_check
      _
    $region31: #{tpu_custom_call.1} parent=1 // pred_check_branch
      %39 = sbr.rel (0) target = $region33
    $region32: #{tpu_custom_call.1} parent=1 // pred_region
      _
    $region33: #{tpu_custom_call.1} parent=1 // pred_fallthru
      _
    // Predicated region
    $region34: #{tpu_custom_call.1} parent=1 // pred_check
      _
    $region35: #{tpu_custom_call.1} parent=1 // pred_check_branch
      %41 = sbr.rel (0) target = $region37
    $region36: #{tpu_custom_call.1} parent=1 // pred_region
      _
    $region37: #{tpu_custom_call.1} parent=1 // pred_fallthru
      _
    // Predicated region
    $region38: #{tpu_custom_call.1} parent=1 // pred_check
      _
    $region39: #{tpu_custom_call.1} parent=1 // pred_check_branch
      %43 = sbr.rel (0) target = $region41
    $region40: #{tpu_custom_call.1} parent=1 // pred_region
      _
    $region41: #{tpu_custom_call.1} parent=1 // pred_fallthru
      _
    // Predicated region
    $region42: #{tpu_custom_call.1} parent=1 // pred_check
      _
    $region43: #{tpu_custom_call.1} parent=1 // pred_check_branch
      %45 = sbr.rel (0) target = $region45
    $region44: #{tpu_custom_call.1} parent=1 // pred_region
      _
    $region45: #{tpu_custom_call.1} parent=1 // pred_fallthru
      _
    // Predicated region
    $region46: #{tpu_custom_call.1} parent=1 // pred_check
      _
    $region47: #{tpu_custom_call.1} parent=1 // pred_check_branch
      %47 = sbr.rel (0) target = $region49
    $region48: #{tpu_custom_call.1} parent=1 // pred_region
      _
    $region49: #{tpu_custom_call.1} parent=1 // pred_fallthru
      _
    // Predicated region
    $region50: #{tpu_custom_call.1} parent=1 // pred_check
      _
    $region51: #{tpu_custom_call.1} parent=1 // pred_check_branch
      %49 = sbr.rel (0) target = $region53
    $region52: #{tpu_custom_call.1} parent=1 // pred_region
      _
    $region53: #{tpu_custom_call.1} parent=1 // pred_fallthru
      _
    %v51 = vld [vmem:[%s0] sm:$0xff]
    %v52 = vld [vmem:[%s0 + $0x8] sm:$0xff]
    %v53 = vld [vmem:[%s0 + $0x10] sm:$0xff]
    %v54 = vld [vmem:[%s0 + $0x18] sm:$0xff]
    %v55 = vpack.c.bf16 %v52, %v51
    %v56 = vpack.c.bf16 %v54, %v53
    %v58 = vshrl.u32 %v55, 16
    %v60 = vrot.slane %v58, 7
    %v61 = vshll.u32 %v55, 16
    %v63 = vor.u32 %v60, %v61
    %v65 = vshrl.u32 %v56, 16
    %v67 = vrot.slane %v65, 7
    %v68 = vshll.u32 %v56, 16
    %v70 = vor.u32 %v67, %v68
    %vm73 = vcmask 1040384
    %vm74 = vsmask.f32 256
    %vm75 = vmand %vm73, %vm74
    %v76 = vsel %vm75, 0, %v63
    %v77 = vsel %vm75, 0, %v70
    %v80 = vrot.slane %v55, 7
    %v81 = vrot.slane %v56, 7
    %vm82 = vcmask 1040384
    %v85 = vsel %vm82, 0, %v80
    %v87 = vsel %vm82, 0, %v81
    %90 = vrot.lane.b32.xlu0 %v76, 5
    %v91 = vpop.permute.xlu0 %90
    %92 = vrot.lane.b32.xlu0 %v77, 5
    %v93 = vpop.permute.xlu0 %92
    %96 = vrot.lane.b32.xlu0 %v85, 10
    %v97 = vpop.permute.xlu0 %96
    %98 = vrot.lane.b32.xlu0 %v87, 10
    %v99 = vpop.permute.xlu0 %98
    %vm100 = vcmask 39936
    %v102 = vsel %vm100, %v55, %v91
    %v104 = vsel %vm100, %v56, %v93
    %vm105 = vcmask 80896
    %v107 = vsel %vm105, %v102, %v97
    %v109 = vsel %vm105, %v104, %v99
    %v110 = vld [vmem:[%s1] sm:$0xf]
    %v111 = vld [vmem:[%s1 + $0x4] sm:$0xf]
    %v112 = vld [vmem:[%s2] sm:$0x1]
    %v114 = vlaneseq
    %v115 = vshrl.u32 %v114, 7
    %v116 = vsub.s32 0, %v115
    %v117 = vrot.slane %v112, %v116
    %v121 = vunpack.c.l.b16 %v110
    %v122 = vunpack.c.l.b16 %v111
    %v123 = vpack.c.b16 %v122, %v121
    %vm124 = vcmask 121856
    %v125 = vsel %vm124, %v107, 0
    %v127 = vsel %vm124, %v109, 0
    %vm129 = vcmask 1046528
    %vm130 = vcmask 1047552
    %v131 = vsel %vm129, 4294967295, 65535
    %v132 = vsel %vm130, %v131, 0
    %v134 = vand.u32 %v123, %v132
    %136 = vmatprep.subr.bf16.mxu0 0
    %137 = vmatpush1.bf16.msra.mxu0 0
    %138 = vmatprep.subr.bf16.mxu0 0
    %139 = vmatpush1.bf16.msra.mxu0 0
    %140 = vmatprep.subr.bf16.mxu0 0
    %141 = vmatpush1.bf16.msra.mxu0 0
    %142 = vmatprep.subr.bf16.mxu0 0
    %143 = vmatpush1.bf16.msra.mxu0 0
    %144 = vmatprep.subr.bf16.mxu0 0
    %145 = vmatpush1.bf16.msra.mxu0 0
    %146 = vmatprep.subr.bf16.mxu0 0
    %147 = vmatpush1.bf16.msra.mxu0 0
    %148 = vmatprep.subr.bf16.mxu0 0
    %149 = vmatpush1.bf16.msra.mxu0 0
    %150 = vmatprep.subr.bf16.mxu0 0
    %151 = vmatpush1.bf16.msra.mxu0 %v134
    %152 = vmatprep.subr.bf16.mxu0 0
    %153 = vmatpush2.bf16.msra.mxu0 0
    %154 = vmatprep.subr.bf16.mxu0 0
    %155 = vmatpush2.bf16.msra.mxu0 0
    %156 = vmatprep.subr.bf16.mxu0 0
    %157 = vmatpush2.bf16.msra.mxu0 0
    %158 = vmatprep.subr.bf16.mxu0 0
    %159 = vmatpush2.bf16.msra.mxu0 0
    %160 = vmatprep.subr.bf16.mxu0 0
    %161 = vmatpush2.bf16.msra.mxu0 0
    %162 = vmatprep.subr.bf16.mxu0 0
    %163 = vmatpush2.bf16.msra.mxu0 0
    %164 = vmatprep.subr.bf16.mxu0 0
    %165 = vmatpush2.bf16.msra.mxu0 0
    %166 = vmatprep.subr.bf16.mxu0 0
    %167 = vmatpush2.bf16.msra.mxu0 0
    %168 = vmatprep.mubr.bf16.mxu0 0
    %169 = vmatmul.mubr.bf16.gmra.mxu0 %v125
    %v170 = vpop.f32.mrf.mxu0
    %v171 = vadd.f32 %v117, %v170
    %v172 = vpop.f32.mrf.mxu0
    %v173 = vpop.f32.mrf.mxu0
    %v174 = vadd.f32 %v117, %v173
    %v175 = vpop.f32.mrf.mxu0
    %176 = vmatprep.mubr.bf16.mxu0 0
    %177 = vmatmul.mubr.bf16.gmra.mxu0 %v127
    %v178 = vpop.f32.mrf.mxu0
    %v179 = vadd.f32 %v117, %v178
    %v180 = vpop.f32.mrf.mxu0
    %v181 = vpop.f32.mrf.mxu0
    %v182 = vadd.f32 %v117, %v181
    %v183 = vpop.f32.mrf.mxu0
    %184 = vdwg.mxu0
    %v185 = vmax.f32 %v171, 0.0
    %v186 = vmax.f32 %v174, 0.0
    %v187 = vmax.f32 %v179, 0.0
    %v188 = vmax.f32 %v182, 0.0
    %v189 = vpack.c.bf16 %v186, %v185
    %v190 = vpack.c.bf16 %v188, %v187
    %v192 = vshrl.u32 %v189, 16
    %v194 = vrot.slane %v192, 7
    %v195 = vshll.u32 %v189, 16
    %v197 = vor.u32 %v194, %v195
    %v199 = vshrl.u32 %v190, 16
    %v201 = vrot.slane %v199, 7
    %v202 = vshll.u32 %v190, 16
    %v204 = vor.u32 %v201, %v202
    %v207 = vsel %vm75, 0, %v197
    %v208 = vsel %vm75, 0, %v204
    %v211 = vrot.slane %v189, 7
    %v212 = vrot.slane %v190, 7
    %v214 = vsel %vm82, 0, %v211
    %v216 = vsel %vm82, 0, %v212
    %219 = vrot.lane.b32.xlu0 %v207, 32
    %v220 = vpop.permute.xlu0 %219
    %221 = vrot.lane.b32.xlu0 %v208, 32
    %v222 = vpop.permute.xlu0 %221
    %225 = vrot.lane.b32.xlu0 %v214, 64
    %v226 = vpop.permute.xlu0 %225
    %227 = vrot.lane.b32.xlu0 %v216, 64
    %v228 = vpop.permute.xlu0 %227
    %vm229 = vcmask 261120
    %v231 = vsel %vm229, %v189, %v220
    %v233 = vsel %vm229, %v190, %v222
    %vm234 = vcmask 523264
    %v236 = vsel %vm234, %v231, %v226
    %v238 = vsel %vm234, %v233, %v228
    %v239 = vld [vmem:[%s3] sm:$0xf]
    %v240 = vld [vmem:[%s3 + $0x4] sm:$0xf]
    %v241 = vld [vmem:[%s3 + $0x8] sm:$0xf]
    %v242 = vld [vmem:[%s3 + $0xc] sm:$0xf]
    %v243 = vld [vmem:[%s3 + $0x10] sm:$0xf]
    %v244 = vld [vmem:[%s3 + $0x14] sm:$0xf]
    %v245 = vld [vmem:[%s3 + $0x18] sm:$0xf]
    %v246 = vld [vmem:[%s3 + $0x1c] sm:$0xf]
    %v247 = vld [vmem:[%s3 + $0x20] sm:$0xf]
    %v248 = vld [vmem:[%s3 + $0x24] sm:$0xf]
    %v249 = vld [vmem:[%s3 + $0x28] sm:$0xf]
    %v250 = vld [vmem:[%s3 + $0x2c] sm:$0xf]
    %v251 = vld [vmem:[%s4] sm:$0x1]
    %v253 = vlaneseq
    %v254 = vshrl.u32 %v253, 7
    %v255 = vsub.s32 0, %v254
    %v256 = vrot.slane %v251, %v255
    %v270 = vunpack.c.l.b16 %v239
    %v271 = vunpack.c.l.b16 %v240
    %v272 = vunpack.c.l.b16 %v241
    %v273 = vunpack.c.l.b16 %v242
    %v274 = vunpack.c.l.b16 %v243
    %v275 = vunpack.c.l.b16 %v244
    %v276 = vunpack.c.l.b16 %v245
    %v277 = vunpack.c.l.b16 %v246
    %v278 = vunpack.c.l.b16 %v247
    %v279 = vunpack.c.l.b16 %v248
    %v280 = vunpack.c.l.b16 %v249
    %v281 = vunpack.c.l.b16 %v250
    %v282 = vpack.c.b16 %v271, %v270
    %v283 = vpack.c.b16 %v273, %v272
    %v284 = vpack.c.b16 %v275, %v274
    %v285 = vpack.c.b16 %v277, %v276
    %v286 = vpack.c.b16 %v279, %v278
    %v287 = vpack.c.b16 %v281, %v280
    %vm294 = vcmask 785408
    %v295 = vsel %vm294, %v236, 0
    %v297 = vsel %vm294, %v238, 0
    %299 = vmatprep.subr.bf16.mxu0 0
    %300 = vmatpush1.bf16.msra.mxu0 0
    %301 = vmatprep.subr.bf16.mxu0 0
    %302 = vmatpush1.bf16.msra.mxu0 0
    %303 = vmatprep.subr.bf16.mxu0 0
    %304 = vmatpush1.bf16.msra.mxu0 %v287
    %305 = vmatprep.subr.bf16.mxu0 0
    %306 = vmatpush1.bf16.msra.mxu0 %v286
    %307 = vmatprep.subr.bf16.mxu0 0
    %308 = vmatpush1.bf16.msra.mxu0 %v285
    %309 = vmatprep.subr.bf16.mxu0 0
    %310 = vmatpush1.bf16.msra.mxu0 %v284
    %311 = vmatprep.subr.bf16.mxu0 0
    %312 = vmatpush1.bf16.msra.mxu0 %v283
    %313 = vmatprep.subr.bf16.mxu0 0
    %314 = vmatpush1.bf16.msra.mxu0 %v282
    %315 = vmatprep.subr.bf16.mxu0 0
    %316 = vmatpush2.bf16.msra.mxu0 0
    %317 = vmatprep.subr.bf16.mxu0 0
    %318 = vmatpush2.bf16.msra.mxu0 0
    %319 = vmatprep.subr.bf16.mxu0 0
    %320 = vmatpush2.bf16.msra.mxu0 0
    %321 = vmatprep.subr.bf16.mxu0 0
    %322 = vmatpush2.bf16.msra.mxu0 0
    %323 = vmatprep.subr.bf16.mxu0 0
    %324 = vmatpush2.bf16.msra.mxu0 0
    %325 = vmatprep.subr.bf16.mxu0 0
    %326 = vmatpush2.bf16.msra.mxu0 0
    %327 = vmatprep.subr.bf16.mxu0 0
    %328 = vmatpush2.bf16.msra.mxu0 0
    %329 = vmatprep.subr.bf16.mxu0 0
    %330 = vmatpush2.bf16.msra.mxu0 0
    %331 = vmatprep.mubr.bf16.mxu0 0
    %332 = vmatmul.mubr.bf16.gmra.mxu0 %v295
    %v333 = vpop.f32.mrf.mxu0
    %v334 = vadd.f32 %v256, %v333
    %v335 = vpop.f32.mrf.mxu0
    %v336 = vpop.f32.mrf.mxu0
    %v337 = vadd.f32 %v256, %v336
    %v338 = vpop.f32.mrf.mxu0
    %339 = vmatprep.mubr.bf16.mxu0 0
    %340 = vmatmul.mubr.bf16.gmra.mxu0 %v297
    %v341 = vpop.f32.mrf.mxu0
    %v342 = vadd.f32 %v256, %v341
    %v343 = vpop.f32.mrf.mxu0
    %v344 = vpop.f32.mrf.mxu0
    %v345 = vadd.f32 %v256, %v344
    %v346 = vpop.f32.mrf.mxu0
    %347 = vdwg.mxu0
    %v348 = vmax.f32 %v334, 0.0
    %v349 = vmax.f32 %v337, 0.0
    %v350 = vmax.f32 %v342, 0.0
    %v351 = vmax.f32 %v345, 0.0
    %v352 = vld [vmem:[%s5] sm:$0x7]
    %v353 = vld [vmem:[%s6] sm:$0x1]
    %v355 = vlaneseq
    %v356 = vshrl.u32 %v355, 7
    %v357 = vsub.s32 0, %v356
    %v358 = vrot.slane %v353, %v357
    %v360 = vsel %vm100, %v55, 0
    %v362 = vsel %vm100, %v56, 0
    %vm364 = vcmask 1041408
    %vm365 = vcmask 1042432
    %v366 = vsel %vm364, 4294967295, 65535
    %v367 = vsel %vm365, %v366, 0
    %v369 = vand.u32 %v352, %v367
    %371 = vmatprep.subr.bf16.mxu0 0
    %372 = vmatpush1.bf16.msra.mxu0 0
    %373 = vmatprep.subr.bf16.mxu0 0
    %374 = vmatpush1.bf16.msra.mxu0 0
    %375 = vmatprep.subr.bf16.mxu0 0
    %376 = vmatpush1.bf16.msra.mxu0 0
    %377 = vmatprep.subr.bf16.mxu0 0
    %378 = vmatpush1.bf16.msra.mxu0 0
    %379 = vmatprep.subr.bf16.mxu0 0
    %380 = vmatpush1.bf16.msra.mxu0 0
    %381 = vmatprep.subr.bf16.mxu0 0
    %382 = vmatpush1.bf16.msra.mxu0 0
    %383 = vmatprep.subr.bf16.mxu0 0
    %384 = vmatpush1.bf16.msra.mxu0 0
    %385 = vmatprep.subr.bf16.mxu0 0
    %386 = vmatpush1.bf16.msra.mxu0 %v369
    %387 = vmatprep.subr.bf16.mxu0 0
    %388 = vmatpush2.bf16.msra.mxu0 0
    %389 = vmatprep.subr.bf16.mxu0 0
    %390 = vmatpush2.bf16.msra.mxu0 0
    %391 = vmatprep.subr.bf16.mxu0 0
    %392 = vmatpush2.bf16.msra.mxu0 0
    %393 = vmatprep.subr.bf16.mxu0 0
    %394 = vmatpush2.bf16.msra.mxu0 0
    %395 = vmatprep.subr.bf16.mxu0 0
    %396 = vmatpush2.bf16.msra.mxu0 0
    %397 = vmatprep.subr.bf16.mxu0 0
    %398 = vmatpush2.bf16.msra.mxu0 0
    %399 = vmatprep.subr.bf16.mxu0 0
    %400 = vmatpush2.bf16.msra.mxu0 0
    %401 = vmatprep.subr.bf16.mxu0 0
    %402 = vmatpush2.bf16.msra.mxu0 0
    %403 = vmatprep.mubr.bf16.mxu0 0
    %404 = vmatmul.mubr.bf16.gmra.mxu0 %v360
    %v405 = vpop.f32.mrf.mxu0
    %v406 = vadd.f32 %v358, %v405
    %v407 = vpop.f32.mrf.mxu0
    %v408 = vpop.f32.mrf.mxu0
    %v409 = vadd.f32 %v358, %v408
    %v410 = vpop.f32.mrf.mxu0
    %411 = vmatprep.mubr.bf16.mxu0 0
    %412 = vmatmul.mubr.bf16.gmra.mxu0 %v362
    %v413 = vpop.f32.mrf.mxu0
    %v414 = vadd.f32 %v358, %v413
    %v415 = vpop.f32.mrf.mxu0
    %v416 = vpop.f32.mrf.mxu0
    %v417 = vadd.f32 %v358, %v416
    %v418 = vpop.f32.mrf.mxu0
    %419 = vdwg.mxu0
    %v420 = vadd.f32 %v348, %v406
    %v421 = vadd.f32 %v349, %v409
    %v422 = vadd.f32 %v350, %v414
    %v423 = vadd.f32 %v351, %v417
    %v424 = vpack.c.bf16 %v421, %v420
    %v425 = vpack.c.bf16 %v423, %v422
    %v428 = vrot.slane %v424, 7
    %v429 = vrot.slane %v425, 7
    %v431 = vsel %vm82, 0, %v428
    %v433 = vsel %vm82, 0, %v429
    %v434 = vrot.slane %v424, 6
    %v435 = vrot.slane %v425, 6
    %v437 = vsel %vm364, 0, %v434
    %v439 = vsel %vm364, 0, %v435
    %442 = vrot.lane.b32.xlu0 %v431, 32
    %v443 = vpop.permute.xlu0 %442
    %444 = vrot.lane.b32.xlu0 %v433, 32
    %v445 = vpop.permute.xlu0 %444
    %448 = vrot.lane.b32.xlu0 %v437, 64
    %v449 = vpop.permute.xlu0 %448
    %450 = vrot.lane.b32.xlu0 %v439, 64
    %v451 = vpop.permute.xlu0 %450
    %v454 = vsel %vm229, %v424, %v443
    %v457 = vsel %vm229, %v425, %v445
    %v459 = vsel %vm234, %v454, %v449
    %v461 = vsel %vm234, %v457, %v451
    %v462 = vld [vmem:[%s7] sm:$0xf]
    %v463 = vld [vmem:[%s7 + $0x4] sm:$0xf]
    %v464 = vld [vmem:[%s7 + $0x8] sm:$0xf]
    %v465 = vld [vmem:[%s7 + $0xc] sm:$0xf]
    %v466 = vld [vmem:[%s7 + $0x10] sm:$0xf]
    %v467 = vld [vmem:[%s7 + $0x14] sm:$0xf]
    %v468 = vld [vmem:[%s7 + $0x18] sm:$0xf]
    %v469 = vld [vmem:[%s7 + $0x1c] sm:$0xf]
    %v470 = vld [vmem:[%s7 + $0x20] sm:$0xf]
    %v471 = vld [vmem:[%s7 + $0x24] sm:$0xf]
    %v472 = vld [vmem:[%s7 + $0x28] sm:$0xf]
    %v473 = vld [vmem:[%s7 + $0x2c] sm:$0xf]
    %v474 = vld [vmem:[%s8] sm:$0x1]
    %v476 = vlaneseq
    %v477 = vshrl.u32 %v476, 7
    %v478 = vsub.s32 0, %v477
    %v479 = vrot.slane %v474, %v478
    %v493 = vunpack.c.l.b16 %v462
    %v494 = vunpack.c.l.b16 %v463
    %v495 = vunpack.c.l.b16 %v464
    %v496 = vunpack.c.l.b16 %v465
    %v497 = vunpack.c.l.b16 %v466
    %v498 = vunpack.c.l.b16 %v467
    %v499 = vunpack.c.l.b16 %v468
    %v500 = vunpack.c.l.b16 %v469
    %v501 = vunpack.c.l.b16 %v470
    %v502 = vunpack.c.l.b16 %v471
    %v503 = vunpack.c.l.b16 %v472
    %v504 = vunpack.c.l.b16 %v473
    %v505 = vpack.c.b16 %v494, %v493
    %v506 = vpack.c.b16 %v496, %v495
    %v507 = vpack.c.b16 %v498, %v497
    %v508 = vpack.c.b16 %v500, %v499
    %v509 = vpack.c.b16 %v502, %v501
    %v510 = vpack.c.b16 %v504, %v503
    %v517 = vsel %vm294, %v459, 0
    %v519 = vsel %vm294, %v461, 0
    %521 = vmatprep.subr.bf16.mxu0 0
    %522 = vmatpush1.bf16.msra.mxu0 0
    %523 = vmatprep.subr.bf16.mxu0 0
    %524 = vmatpush1.bf16.msra.mxu0 0
    %525 = vmatprep.subr.bf16.mxu0 0
    %526 = vmatpush1.bf16.msra.mxu0 %v510
    %527 = vmatprep.subr.bf16.mxu0 0
    %528 = vmatpush1.bf16.msra.mxu0 %v509
    %529 = vmatprep.subr.bf16.mxu0 0
    %530 = vmatpush1.bf16.msra.mxu0 %v508
    %531 = vmatprep.subr.bf16.mxu0 0
    %532 = vmatpush1.bf16.msra.mxu0 %v507
    %533 = vmatprep.subr.bf16.mxu0 0
    %534 = vmatpush1.bf16.msra.mxu0 %v506
    %535 = vmatprep.subr.bf16.mxu0 0
    %536 = vmatpush1.bf16.msra.mxu0 %v505
    %537 = vmatprep.subr.bf16.mxu0 0
    %538 = vmatpush2.bf16.msra.mxu0 0
    %539 = vmatprep.subr.bf16.mxu0 0
    %540 = vmatpush2.bf16.msra.mxu0 0
    %541 = vmatprep.subr.bf16.mxu0 0
    %542 = vmatpush2.bf16.msra.mxu0 0
    %543 = vmatprep.subr.bf16.mxu0 0
    %544 = vmatpush2.bf16.msra.mxu0 0
    %545 = vmatprep.subr.bf16.mxu0 0
    %546 = vmatpush2.bf16.msra.mxu0 0
    %547 = vmatprep.subr.bf16.mxu0 0
    %548 = vmatpush2.bf16.msra.mxu0 0
    %549 = vmatprep.subr.bf16.mxu0 0
    %550 = vmatpush2.bf16.msra.mxu0 0
    %551 = vmatprep.subr.bf16.mxu0 0
    %552 = vmatpush2.bf16.msra.mxu0 0
    %553 = vmatprep.mubr.bf16.mxu0 0
    %554 = vmatmul.mubr.bf16.gmra.mxu0 %v517
    %v555 = vpop.f32.mrf.mxu0
    %v556 = vadd.f32 %v479, %v555
    %v557 = vpop.f32.mrf.mxu0
    %v558 = vpop.f32.mrf.mxu0
    %v559 = vadd.f32 %v479, %v558
    %v560 = vpop.f32.mrf.mxu0
    %561 = vmatprep.mubr.bf16.mxu0 0
    %562 = vmatmul.mubr.bf16.gmra.mxu0 %v519
    %v563 = vpop.f32.mrf.mxu0
    %v564 = vadd.f32 %v479, %v563
    %v565 = vpop.f32.mrf.mxu0
    %v566 = vpop.f32.mrf.mxu0
    %v567 = vadd.f32 %v479, %v566
    %v568 = vpop.f32.mrf.mxu0
    %569 = vdwg.mxu0
    %v570 = vmax.f32 %v556, 0.0
    %v571 = vmax.f32 %v559, 0.0
    %v572 = vmax.f32 %v564, 0.0
    %v573 = vmax.f32 %v567, 0.0
    %v574 = vpack.c.bf16 %v571, %v570
    %v575 = vpack.c.bf16 %v573, %v572
    %v578 = vrot.slane %v574, 7
    %v579 = vrot.slane %v575, 7
    %v581 = vsel %vm82, 0, %v578
    %v583 = vsel %vm82, 0, %v579
    %v584 = vrot.slane %v574, 6
    %v585 = vrot.slane %v575, 6
    %v587 = vsel %vm364, 0, %v584
    %v589 = vsel %vm364, 0, %v585
    %592 = vrot.lane.b32.xlu0 %v581, 32
    %v593 = vpop.permute.xlu0 %592
    %594 = vrot.lane.b32.xlu0 %v583, 32
    %v595 = vpop.permute.xlu0 %594
    %598 = vrot.lane.b32.xlu0 %v587, 64
    %v599 = vpop.permute.xlu0 %598
    %600 = vrot.lane.b32.xlu0 %v589, 64
    %v601 = vpop.permute.xlu0 %600
    %v604 = vsel %vm229, %v574, %v593
    %v607 = vsel %vm229, %v575, %v595
    %v609 = vsel %vm234, %v604, %v599
    %v611 = vsel %vm234, %v607, %v601
    %v612 = vld [vmem:[%s9] sm:$0xf]
    %v613 = vld [vmem:[%s9 + $0x4] sm:$0xf]
    %v614 = vld [vmem:[%s9 + $0x8] sm:$0xf]
    %v615 = vld [vmem:[%s9 + $0xc] sm:$0xf]
    %v616 = vld [vmem:[%s9 + $0x10] sm:$0xf]
    %v617 = vld [vmem:[%s9 + $0x14] sm:$0xf]
    %v618 = vld [vmem:[%s9 + $0x18] sm:$0xf]
    %v619 = vld [vmem:[%s9 + $0x1c] sm:$0xf]
    %v620 = vld [vmem:[%s9 + $0x20] sm:$0xf]
    %v621 = vld [vmem:[%s9 + $0x24] sm:$0xf]
    %v622 = vld [vmem:[%s9 + $0x28] sm:$0xf]
    %v623 = vld [vmem:[%s9 + $0x2c] sm:$0xf]
    %v624 = vld [vmem:[%s10] sm:$0x1]
    %v626 = vlaneseq
    %v627 = vshrl.u32 %v626, 7
    %v628 = vsub.s32 0, %v627
    %v629 = vrot.slane %v624, %v628
    %v643 = vunpack.c.l.b16 %v612
    %v644 = vunpack.c.l.b16 %v613
    %v645 = vunpack.c.l.b16 %v614
    %v646 = vunpack.c.l.b16 %v615
    %v647 = vunpack.c.l.b16 %v616
    %v648 = vunpack.c.l.b16 %v617
    %v649 = vunpack.c.l.b16 %v618
    %v650 = vunpack.c.l.b16 %v619
    %v651 = vunpack.c.l.b16 %v620
    %v652 = vunpack.c.l.b16 %v621
    %v653 = vunpack.c.l.b16 %v622
    %v654 = vunpack.c.l.b16 %v623
    %v655 = vpack.c.b16 %v644, %v643
    %v656 = vpack.c.b16 %v646, %v645
    %v657 = vpack.c.b16 %v648, %v647
    %v658 = vpack.c.b16 %v650, %v649
    %v659 = vpack.c.b16 %v652, %v651
    %v660 = vpack.c.b16 %v654, %v653
    %v667 = vsel %vm294, %v609, 0
    %v669 = vsel %vm294, %v611, 0
    %671 = vmatprep.subr.bf16.mxu0 0
    %672 = vmatpush1.bf16.msra.mxu0 0
    %673 = vmatprep.subr.bf16.mxu0 0
    %674 = vmatpush1.bf16.msra.mxu0 0
    %675 = vmatprep.subr.bf16.mxu0 0
    %676 = vmatpush1.bf16.msra.mxu0 %v660
    %677 = vmatprep.subr.bf16.mxu0 0
    %678 = vmatpush1.bf16.msra.mxu0 %v659
    %679 = vmatprep.subr.bf16.mxu0 0
    %680 = vmatpush1.bf16.msra.mxu0 %v658
    %681 = vmatprep.subr.bf16.mxu0 0
    %682 = vmatpush1.bf16.msra.mxu0 %v657
    %683 = vmatprep.subr.bf16.mxu0 0
    %684 = vmatpush1.bf16.msra.mxu0 %v656
    %685 = vmatprep.subr.bf16.mxu0 0
    %686 = vmatpush1.bf16.msra.mxu0 %v655
    %687 = vmatprep.subr.bf16.mxu0 0
    %688 = vmatpush2.bf16.msra.mxu0 0
    %689 = vmatprep.subr.bf16.mxu0 0
    %690 = vmatpush2.bf16.msra.mxu0 0
    %691 = vmatprep.subr.bf16.mxu0 0
    %692 = vmatpush2.bf16.msra.mxu0 0
    %693 = vmatprep.subr.bf16.mxu0 0
    %694 = vmatpush2.bf16.msra.mxu0 0
    %695 = vmatprep.subr.bf16.mxu0 0
    %696 = vmatpush2.bf16.msra.mxu0 0
    %697 = vmatprep.subr.bf16.mxu0 0
    %698 = vmatpush2.bf16.msra.mxu0 0
    %699 = vmatprep.subr.bf16.mxu0 0
    %700 = vmatpush2.bf16.msra.mxu0 0
    %701 = vmatprep.subr.bf16.mxu0 0
    %702 = vmatpush2.bf16.msra.mxu0 0
    %703 = vmatprep.mubr.bf16.mxu0 0
    %704 = vmatmul.mubr.bf16.gmra.mxu0 %v667
    %v705 = vpop.f32.mrf.mxu0
    %v706 = vadd.f32 %v629, %v705
    %v707 = vpop.f32.mrf.mxu0
    %v708 = vpop.f32.mrf.mxu0
    %v709 = vadd.f32 %v629, %v708
    %v710 = vpop.f32.mrf.mxu0
    %711 = vmatprep.mubr.bf16.mxu0 0
    %712 = vmatmul.mubr.bf16.gmra.mxu0 %v669
    %v713 = vpop.f32.mrf.mxu0
    %v714 = vadd.f32 %v629, %v713
    %v715 = vpop.f32.mrf.mxu0
    %v716 = vpop.f32.mrf.mxu0
    %v717 = vadd.f32 %v629, %v716
    %v718 = vpop.f32.mrf.mxu0
    %719 = vdwg.mxu0
    %v720 = vadd.f32 %v706, %v420
    %v721 = vadd.f32 %v709, %v421
    %v722 = vadd.f32 %v714, %v422
    %v723 = vadd.f32 %v717, %v423
    %724 = vst.msk [vmem:[#allocation5] sm:$0xff] %vm229, %v720
    %725 = vst.msk [vmem:[#allocation5 + $0x8] sm:$0xff] %vm229, %v721
    %726 = vst.msk [vmem:[#allocation5 + $0x10] sm:$0xff] %vm229, %v722
    %727 = vst.msk [vmem:[#allocation5 + $0x18] sm:$0xff] %vm229, %v723
    %v728 = vld [vmem:[%s11] sm:$0x1]
    %v730 = vlaneseq
    %v731 = vshrl.u32 %v730, 7
    %v732 = vsub.s32 0, %v731
    %v733 = vrot.slane %v728, %v732
    %v735 = vmul.f32 %v720, %v733
    %v736 = vmul.f32 %v721, %v733
    %v737 = vmul.f32 %v722, %v733
    %v738 = vmul.f32 %v723, %v733
    %v739 = vsel %vm229, %v735, 0.0
    %740 = vadd.xlane.f32.xlu0 %v739
    %v741 = vpop.xlane.xlu0 %740
    %v742 = vsel %vm229, %v736, 0.0
    %743 = vadd.xlane.f32.xlu0 %v742
    %v744 = vpop.xlane.xlu0 %743
    %v745 = vsel %vm229, %v737, 0.0
    %746 = vadd.xlane.f32.xlu0 %v745
    %v747 = vpop.xlane.xlu0 %746
    %v748 = vsel %vm229, %v738, 0.0
    %749 = vadd.xlane.f32.xlu0 %v748
    %v750 = vpop.xlane.xlu0 %749
    %v751 = vld [vmem:[#allocation2] sm:$0x1]
    %v753 = vlaneseq
    %v754 = vshrl.u32 %v753, 7
    %v755 = vsub.s32 0, %v754
    %v756 = vrot.slane %v751, %v755
    %757 = vset.pattern.permute.xlu0 0
    %758 = vperm.xlu0 %757, %v756
    %v759 = vpop.permute.xlu0 %758
    %v761 = vadd.f32 %v741, %v759
    %v762 = vadd.f32 %v744, %v759
    %v763 = vadd.f32 %v747, %v759
    %v764 = vadd.f32 %v750, %v759
    %v769 = vlaneseq
    %v770 = vand.u32 %v769, 127
    %v771 = vlaneseq
    %v772 = vshrl.u32 %v771, 7
    %v773 = vsub.s32 %v770, %v772
    %v774 = vrot.slane %v761, %v773
    %v775 = vadd.s32 %v770, 4294967288
    %v776 = vlaneseq
    %v777 = vshrl.u32 %v776, 7
    %v778 = vsub.s32 %v775, %v777
    %v779 = vrot.slane %v762, %v778
    %vm780 = vcmask 130112
    %v781 = vsel %vm780, %v779, %v774
    %v782 = vlaneseq
    %v783 = vshrl.u32 %v782, 7
    %v784 = vsub.s32 %v770, %v783
    %v785 = vrot.slane %v763, %v784
    %v786 = vlaneseq
    %v787 = vshrl.u32 %v786, 7
    %v788 = vsub.s32 %v775, %v787
    %v789 = vrot.slane %v764, %v788
    %v790 = vsel %vm780, %v789, %v785
    %vm791 = vcmask 1041409
    %v792 = vsel %vm791, %v790, %v781
    %vm794 = vcmask 123904
    %795 = vst.msk [vmem:[#allocation3] sm:$0x3] %vm794, %v792
    // Predicated region
    $region54: #{tpu_custom_call.1} parent=1 // pred_check
      _
    $region55: #{tpu_custom_call.1} parent=1 // pred_check_branch
      %797 = sbr.rel (0) target = $region57
    $region56: #{tpu_custom_call.1} parent=1 // pred_region
      %s799 = ssub.s32 32, 32
      %800 = vsyncadd [#allocation4], %s799
      %s802 = sshll.u32 [#allocation3], 4
      %s803 = int_to_ptr.vmem [resolvable:$true] %s802
      %805 = dma.vmem_to_hbm [thread:$0]  %s803, 32, %s13, [#allocation4]
    $region57: #{tpu_custom_call.1} parent=1 // pred_fallthru
      _
    // Predicated region
    $region58: #{tpu_custom_call.1} parent=1 // pred_check
      _
    $region59: #{tpu_custom_call.1} parent=1 // pred_check_branch
      %807 = sbr.rel (0) target = $region61
    $region60: #{tpu_custom_call.1} parent=1 // pred_region
      %s809 = ssub.s32 512, 512
      %810 = vsyncadd [#allocation6], %s809
      %s811 = sshll.u32 [#allocation5], 4
      %s812 = int_to_ptr.vmem [resolvable:$true] %s811
      %817 = dma.vmem_to_hbm [thread:$0]  %s812, 512, %s14, [#allocation6], 128, 128, 8
    $region61: #{tpu_custom_call.1} parent=1 // pred_fallthru
      _
    // Predicated region
    $region62: #{tpu_custom_call.1} parent=1 // pred_check
      _
    $region63: #{tpu_custom_call.1} parent=1 // pred_check_branch
      %819 = sbr.rel (0) target = $region65
    $region64: #{tpu_custom_call.1} parent=1 // pred_region
      %820 = dma.done [#allocation4], 32
    $region65: #{tpu_custom_call.1} parent=1 // pred_fallthru
      _
    // Predicated region
    $region66: #{tpu_custom_call.1} parent=1 // pred_check
      _
    $region67: #{tpu_custom_call.1} parent=1 // pred_check_branch
      %822 = sbr.rel (0) target = $region69
    $region68: #{tpu_custom_call.1} parent=1 // pred_region
      %823 = dma.done [#allocation6], 512
    $region69: #{tpu_custom_call.1} parent=1 // pred_fallthru
      _
    %824 = vsyncpa [#allocation4], 1
    %825 = vsyncpa [#allocation6], 1

</llo_original>
